<compile_context>
chip_gen: v5e
topology: v5e:2x2
jax: 0.10.0
libtpu: 0.0.40
codegen_flags: <defaults>
</compile_context>

<pallas_src>
import jax
import jax.numpy as jnp
from jax.experimental import pallas as pl
from jax.experimental.pallas import tpu as pltpu

# Module hyper-parameters (compile-time constants, as in MemActor.__init__)
MAX_ACTION = 1.0
LIPZ = 1.0
LAMDA = 1.0

_TB_MAX = 8192                     # upper bound on the batch tile
_VMEM_BUDGET = 32 * 1024 * 1024    # per-tile working-set target (safe on v7x)


def _round_up(x: int, m: int) -> int:
    return (x + m - 1) // m * m


def _cdiv(a: int, b: int) -> int:
    return -(-a // b)


def _lane_pad(n: int) -> int:
    # VMEM stores the minor dim in 128-lane tiles, so narrow feature dims are
    # padded to 128 when sizing the per-tile footprint.
    return _round_up(max(n, 1), 128)


def memactor_kernel(beta_ref,
                    obs_ref, mem_ref, dist_ref,
                    w1_ref, b1_ref, w2_ref, b2_ref, wl_ref, bl_ref,
                    out_ref):
    """One batch tile in natural [batch, feature] layout (batch on MXU M)."""
    beta = beta_ref[0, 0]

    # --- backbone: 2-layer ReLU MLP (fp32 MXU inputs, fp32 accumulation) ---
    x = obs_ref[...]                                                    # [TB, OBS]
    h1 = jnp.dot(x, w1_ref[...], preferred_element_type=jnp.float32)   # [TB, H]
    h1 = jnp.maximum(h1 + b1_ref[...], 0.0)
    h2 = jnp.dot(h1, w2_ref[...], preferred_element_type=jnp.float32)  # [TB, H]
    h2 = jnp.maximum(h2 + b2_ref[...], 0.0)

    # --- last linear ---
    z = jnp.dot(h2, wl_ref[...], preferred_element_type=jnp.float32) + bl_ref[...]

    # --- shifted_crazy_relu(z, beta) = 2*crazy_relu(0.5*(z+1), beta) - 1 ---
    # algebraically simplified to act directly on z:
    #   mem_act = where(z >= -1, z+1, beta*(z+1)) - (1-beta)*max(z-1, 0) - 1
    zp1 = z + 1.0
    mem_act = (jnp.where(z >= -1.0, zp1, beta * zp1)
               - (1.0 - beta) * jnp.maximum(z - 1.0, 0.0) - 1.0)

    # --- memory mixing (dist column broadcasts over the action axis) ---
    e = jnp.exp(-(LAMDA * 10.0) * dist_ref[...])                        # [TB, 1]
    out_ref[...] = mem_ref[...] * e + (LIPZ * MAX_ACTION) * (1.0 - e) * mem_act


@jax.jit
def memactor_forward(obs, mem_actions, dist, beta,
                     w1, b1, w2, b2, w_last, b_last):
    """obs:[B,OBS], mem_actions:[B,A], dist:[B,1]; weights in [in,out] layout."""
    B, OBS = obs.shape
    H = w1.shape[1]
    A = w_last.shape[1]

    # --- batch tiling: derive TB from a VMEM budget, minimise padding -------
    # Per-batch-row VMEM bytes: double-buffered streamed blocks (obs, mem,
    # dist, out) plus fp32 intermediates (h1/h2/z), all lane-padded to 128.
    per_row = 4 * (2 * (_lane_pad(OBS) + 2 * _lane_pad(A) + _lane_pad(1))
                   + 4 * _lane_pad(H))
    tb_cap = min(_TB_MAX, max(8, (_VMEM_BUDGET // per_row) // 8 * 8))

    n_tiles = _cdiv(B, tb_cap)
    if B >= 1024:
        n_tiles = max(n_tiles, 2)      # give v7x's second TensorCore work
    if n_tiles > 1 and n_tiles % 2:
        n_tiles += 1                   # even split across two cores
    TB = _round_up(_cdiv(B, n_tiles), 8)   # batch is on sublanes -> 8-aligned
    B_pad = n_tiles * TB
    pad = B_pad - B

    obs_f = obs.astype(jnp.float32)
    mem_f = mem_actions.astype(jnp.float32)
    dst_f = dist.astype(jnp.float32)
    if pad:
        # Only awkward batch sizes pay this copy; padded dist rows are 0 so
        # the padded outputs stay finite (they are sliced off below).
        obs_f = jnp.pad(obs_f, ((0, pad), (0, 0)))
        mem_f = jnp.pad(mem_f, ((0, pad), (0, 0)))
        dst_f = jnp.pad(dst_f, ((0, pad), (0, 0)))

    beta_arr = jnp.asarray(beta, jnp.float32).reshape(1, 1)
    w1f = w1.astype(jnp.float32)
    w2f = w2.astype(jnp.float32)
    wlf = w_last.astype(jnp.float32)
    b1r = b1.reshape(1, H).astype(jnp.float32)
    b2r = b2.reshape(1, H).astype(jnp.float32)
    blr = b_last.reshape(1, A).astype(jnp.float32)

    def stream(cols):       # streamed over the batch grid, double-buffered
        return pl.BlockSpec((TB, cols), lambda i: (i, 0))

    def resident(rows, cols):  # constant index_map -> VMEM-resident weights
        return pl.BlockSpec((rows, cols), lambda i: (0, 0))

    grid_spec = pltpu.PrefetchScalarGridSpec(
        num_scalar_prefetch=0,
        grid=(n_tiles,),
        in_specs=[
            pl.BlockSpec(memory_space=pltpu.MemorySpace.SMEM),  # beta scalar
            stream(OBS),        # obs
            stream(A),          # mem_actions
            stream(1),          # dist
            resident(OBS, H),   # w1
            resident(1, H),     # b1
            resident(H, H),     # w2
            resident(1, H),     # b2
            resident(H, A),     # w_last
            resident(1, A),     # b_last
        ],
        out_specs=pl.BlockSpec((TB, A), lambda i: (i, 0)),
    )

    # VMEM limit derived from the actual tile with headroom, capped for v7x
    # (64 MiB physical); v5e/v6e have 128 MiB so this is never binding there.
    vmem_limit = int(min(64 * 1024 * 1024,
                         max(32 * 1024 * 1024, per_row * TB * 3 // 2)))

    out = pl.pallas_call(
        memactor_kernel,
        out_shape=jax.ShapeDtypeStruct((B_pad, A), jnp.float32),
        grid_spec=grid_spec,
        compiler_params=pltpu.CompilerParams(
            # On v7x, pltpu.CORE_PARALLEL on this axis would force the 2-core
            # split; "parallel" is kept for portability across v5e/v6e/v7x.
            dimension_semantics=("parallel",),
            vmem_limit_bytes=vmem_limit,
        ),
    )(beta_arr, obs_f, mem_f, dst_f, w1f, b1r, w2f, b2r, wlf, blr)

    return out if pad == 0 else out[:B]


def reference_forward(obs, mem_actions, dist, beta,
                      w1, b1, w2, b2, w_last, b_last):
    """Pure-JAX fp32 reference mirroring the PyTorch forward."""
    h1 = jnp.maximum(obs @ w1 + b1, 0.0)
    logits = jnp.maximum(h1 @ w2 + b2, 0.0)
    z = logits @ w_last + b_last
    y = 0.5 * (z + 1.0)
    crazy = jnp.where(y >= 0.0, y, beta * y) - (1.0 - beta) * jnp.maximum(y - 1.0, 0.0)
    mem_act = 2.0 * crazy - 1.0
    e = jnp.exp(-(LAMDA * 10.0) * dist)
    return mem_actions * e + LIPZ * (1.0 - e) * MAX_ACTION * mem_act


if __name__ == "__main__":
    # Small, shape-consistent example: batch=8, obs_dim=16, hidden=32, action_dim=8
    B, OBS, H, A = 8, 16, 32, 8
    key = jax.random.PRNGKey(0)
    ks = jax.random.split(key, 9)

    obs = jax.random.normal(ks[0], (B, OBS), jnp.float32)
    mem_actions = jax.random.uniform(ks[1], (B, A), jnp.float32, -1.0, 1.0)
    dist = jax.random.uniform(ks[2], (B, 1), jnp.float32, 0.0, 0.5)
    beta = 0.1

    # Deterministic synthetic parameters (backbone: OBS->H->H MLP, last: H->A)
    w1 = jax.random.normal(ks[3], (OBS, H), jnp.float32) * 0.1
    b1 = jax.random.normal(ks[4], (H,), jnp.float32) * 0.01
    w2 = jax.random.normal(ks[5], (H, H), jnp.float32) * 0.1
    b2 = jax.random.normal(ks[6], (H,), jnp.float32) * 0.01
    w_last = jax.random.normal(ks[7], (H, A), jnp.float32) * 0.1
    b_last = jax.random.normal(ks[8], (A,), jnp.float32) * 0.01

    out = memactor_forward(obs, mem_actions, dist, beta,
                           w1, b1, w2, b2, w_last, b_last)
    out = jax.block_until_ready(out)

    ref = reference_forward(obs, mem_actions, dist, beta,
                            w1, b1, w2, b2, w_last, b_last)
    assert out.shape == (B, A)
    # fp32 path; loose tolerance still covers TPU default matmul precision.
    assert jnp.allclose(out, ref, atol=2e-2, rtol=2e-2), (
        f"mismatch vs reference, max abs err = {jnp.max(jnp.abs(out - ref))}")

    print("KERNEL_OK")
</pallas_src>

<mosaic_0001>
module attributes {stable_mosaic.version = 11 : i64} {
  func.func @memactor_kernel(%arg0: i32, %arg1: memref<1x1xf32, #tpu.memory_space<smem>>, %arg2: memref<8x16xf32, #tpu.memory_space<vmem>>, %arg3: memref<8x8xf32, #tpu.memory_space<vmem>>, %arg4: memref<8x1xf32, #tpu.memory_space<vmem>>, %arg5: memref<16x32xf32, #tpu.memory_space<vmem>>, %arg6: memref<1x32xf32, #tpu.memory_space<vmem>>, %arg7: memref<32x32xf32, #tpu.memory_space<vmem>>, %arg8: memref<1x32xf32, #tpu.memory_space<vmem>>, %arg9: memref<32x8xf32, #tpu.memory_space<vmem>>, %arg10: memref<1x8xf32, #tpu.memory_space<vmem>>, %arg11: memref<8x8xf32, #tpu.memory_space<vmem>>) attributes {dimension_semantics = [#tpu.dimension_semantics<parallel>], iteration_bounds = array<i64: 1>, scalar_prefetch = 0 : i64, scratch_operands = 0 : i64, tpu.core_type = #tpu.core_type<tc>, window_params = [{transform_indices = @transform_0, window_bounds = array<i64: 1, 1>}, {transform_indices = @transform_1, window_bounds = array<i64: 8, 16>}, {transform_indices = @transform_2, window_bounds = array<i64: 8, 8>}, {transform_indices = @transform_3, window_bounds = array<i64: 8, 1>}, {pipeline_mode = #tpu.pipeline_mode<synchronous>, transform_indices = @transform_4, window_bounds = array<i64: 16, 32>}, {pipeline_mode = #tpu.pipeline_mode<synchronous>, transform_indices = @transform_5, window_bounds = array<i64: 1, 32>}, {pipeline_mode = #tpu.pipeline_mode<synchronous>, transform_indices = @transform_6, window_bounds = array<i64: 32, 32>}, {pipeline_mode = #tpu.pipeline_mode<synchronous>, transform_indices = @transform_7, window_bounds = array<i64: 1, 32>}, {pipeline_mode = #tpu.pipeline_mode<synchronous>, transform_indices = @transform_8, window_bounds = array<i64: 32, 8>}, {pipeline_mode = #tpu.pipeline_mode<synchronous>, transform_indices = @transform_9, window_bounds = array<i64: 1, 8>}, {transform_indices = @transform_10, window_bounds = array<i64: 8, 8>}]} {
    %c0 = arith.constant 0 : index
    %c0_0 = arith.constant 0 : index
    %0 = memref.load %arg1[%c0, %c0_0] : memref<1x1xf32, #tpu.memory_space<smem>>
    %c0_1 = arith.constant 0 : index
    %c0_2 = arith.constant 0 : index
    %1 = vector.load %arg2[%c0_1, %c0_2] : memref<8x16xf32, #tpu.memory_space<vmem>>, vector<8x16xf32>
    %c0_3 = arith.constant 0 : index
    %c0_4 = arith.constant 0 : index
    %2 = vector.load %arg5[%c0_3, %c0_4] : memref<16x32xf32, #tpu.memory_space<vmem>>, vector<16x32xf32>
    %cst = arith.constant dense<0.000000e+00> : vector<8x32xf32>
    %3 = tpu.matmul %1, %2, %cst {dimension_numbers = #tpu.dot_dimension_numbers<[1], [0], [0], [1], [0, 0, 1, 1], [], []>} : vector<8x16xf32>, vector<16x32xf32>, vector<8x32xf32> -> vector<8x32xf32>
    %c0_5 = arith.constant 0 : index
    %c0_6 = arith.constant 0 : index
    %4 = vector.load %arg6[%c0_5, %c0_6] : memref<1x32xf32, #tpu.memory_space<vmem>>, vector<1x32xf32>
    %5 = vector.broadcast %4 : vector<1x32xf32> to vector<8x32xf32>
    %6 = arith.addf %3, %5 : vector<8x32xf32>
    %cst_7 = arith.constant 0.000000e+00 : f32
    %7 = vector.broadcast %cst_7 : f32 to vector<8x32xf32>
    %8 = arith.maximumf %6, %7 : vector<8x32xf32>
    %c0_8 = arith.constant 0 : index
    %c0_9 = arith.constant 0 : index
    %9 = vector.load %arg7[%c0_8, %c0_9] : memref<32x32xf32, #tpu.memory_space<vmem>>, vector<32x32xf32>
    %cst_10 = arith.constant dense<0.000000e+00> : vector<8x32xf32>
    %10 = tpu.matmul %8, %9, %cst_10 {dimension_numbers = #tpu.dot_dimension_numbers<[1], [0], [0], [1], [0, 0, 1, 1], [], []>} : vector<8x32xf32>, vector<32x32xf32>, vector<8x32xf32> -> vector<8x32xf32>
    %c0_11 = arith.constant 0 : index
    %c0_12 = arith.constant 0 : index
    %11 = vector.load %arg8[%c0_11, %c0_12] : memref<1x32xf32, #tpu.memory_space<vmem>>, vector<1x32xf32>
    %12 = vector.broadcast %11 : vector<1x32xf32> to vector<8x32xf32>
    %13 = arith.addf %10, %12 : vector<8x32xf32>
    %cst_13 = arith.constant 0.000000e+00 : f32
    %14 = vector.broadcast %cst_13 : f32 to vector<8x32xf32>
    %15 = arith.maximumf %13, %14 : vector<8x32xf32>
    %c0_14 = arith.constant 0 : index
    %c0_15 = arith.constant 0 : index
    %16 = vector.load %arg9[%c0_14, %c0_15] : memref<32x8xf32, #tpu.memory_space<vmem>>, vector<32x8xf32>
    %cst_16 = arith.constant dense<0.000000e+00> : vector<8x8xf32>
    %17 = tpu.matmul %15, %16, %cst_16 {dimension_numbers = #tpu.dot_dimension_numbers<[1], [0], [0], [1], [0, 0, 1, 1], [], []>} : vector<8x32xf32>, vector<32x8xf32>, vector<8x8xf32> -> vector<8x8xf32>
    %c0_17 = arith.constant 0 : index
    %c0_18 = arith.constant 0 : index
    %18 = vector.load %arg10[%c0_17, %c0_18] : memref<1x8xf32, #tpu.memory_space<vmem>>, vector<1x8xf32>
    %19 = vector.broadcast %18 : vector<1x8xf32> to vector<8x8xf32>
    %20 = arith.addf %17, %19 : vector<8x8xf32>
    %cst_19 = arith.constant 1.000000e+00 : f32
    %21 = vector.broadcast %cst_19 : f32 to vector<8x8xf32>
    %22 = arith.addf %20, %21 : vector<8x8xf32>
    %cst_20 = arith.constant -1.000000e+00 : f32
    %23 = vector.broadcast %cst_20 : f32 to vector<8x8xf32>
    %24 = arith.cmpf oge, %20, %23 : vector<8x8xf32>
    %25 = vector.broadcast %0 : f32 to vector<8x8xf32>
    %26 = arith.mulf %25, %22 : vector<8x8xf32>
    %27 = arith.select %24, %22, %26 : vector<8x8xi1>, vector<8x8xf32>
    %cst_21 = arith.constant 1.000000e+00 : f32
    %28 = arith.subf %cst_21, %0 : f32
    %cst_22 = arith.constant 1.000000e+00 : f32
    %29 = vector.broadcast %cst_22 : f32 to vector<8x8xf32>
    %30 = arith.subf %20, %29 : vector<8x8xf32>
    %cst_23 = arith.constant 0.000000e+00 : f32
    %31 = vector.broadcast %cst_23 : f32 to vector<8x8xf32>
    %32 = arith.maximumf %30, %31 : vector<8x8xf32>
    %33 = vector.broadcast %28 : f32 to vector<8x8xf32>
    %34 = arith.mulf %33, %32 : vector<8x8xf32>
    %35 = arith.subf %27, %34 : vector<8x8xf32>
    %cst_24 = arith.constant 1.000000e+00 : f32
    %36 = vector.broadcast %cst_24 : f32 to vector<8x8xf32>
    %37 = arith.subf %35, %36 : vector<8x8xf32>
    %c0_25 = arith.constant 0 : index
    %c0_26 = arith.constant 0 : index
    %38 = vector.load %arg4[%c0_25, %c0_26] : memref<8x1xf32, #tpu.memory_space<vmem>>, vector<8x1xf32>
    %cst_27 = arith.constant -1.000000e+01 : f32
    %39 = vector.broadcast %cst_27 : f32 to vector<8x1xf32>
    %40 = arith.mulf %39, %38 : vector<8x1xf32>
    %41 = math.exp %40 : vector<8x1xf32>
    %c0_28 = arith.constant 0 : index
    %c0_29 = arith.constant 0 : index
    %42 = vector.load %arg3[%c0_28, %c0_29] : memref<8x8xf32, #tpu.memory_space<vmem>>, vector<8x8xf32>
    %43 = vector.broadcast %41 : vector<8x1xf32> to vector<8x8xf32>
    %44 = arith.mulf %42, %43 : vector<8x8xf32>
    %cst_30 = arith.constant 1.000000e+00 : f32
    %45 = vector.broadcast %cst_30 : f32 to vector<8x1xf32>
    %46 = arith.subf %45, %41 : vector<8x1xf32>
    %cst_31 = arith.constant 1.000000e+00 : f32
    %47 = vector.broadcast %cst_31 : f32 to vector<8x1xf32>
    %48 = arith.mulf %47, %46 : vector<8x1xf32>
    %49 = vector.broadcast %48 : vector<8x1xf32> to vector<8x8xf32>
    %50 = arith.mulf %49, %37 : vector<8x8xf32>
    %51 = arith.addf %44, %50 : vector<8x8xf32>
    %c0_32 = arith.constant 0 : index
    %c0_33 = arith.constant 0 : index
    %52 = vector.load %arg11[%c0_32, %c0_33] : memref<8x8xf32, #tpu.memory_space<vmem>>, vector<8x8xf32>
    tpu.vector_store %arg11[%c0_32, %c0_33], %51 {strides = array<i32>} : memref<8x8xf32, #tpu.memory_space<vmem>>, vector<8x8xf32>,
    return
  }
  func.func @transform_0(%arg0: i32) -> (i32, i32) {
    %c0_i32 = arith.constant 0 : i32
    %c0_i32_0 = arith.constant 0 : i32
    %c0_i32_1 = arith.constant 0 : i32
    return %c0_i32, %c0_i32_0 : i32, i32
  }
  func.func @transform_1(%arg0: i32) -> (i32, i32) {
    %c0_i32 = arith.constant 0 : i32
    %c0_i32_0 = arith.constant 0 : i32
    return %arg0, %c0_i32 : i32, i32
  }
  func.func @transform_2(%arg0: i32) -> (i32, i32) {
    %c0_i32 = arith.constant 0 : i32
    %c0_i32_0 = arith.constant 0 : i32
    return %arg0, %c0_i32 : i32, i32
  }
  func.func @transform_3(%arg0: i32) -> (i32, i32) {
    %c0_i32 = arith.constant 0 : i32
    %c0_i32_0 = arith.constant 0 : i32
    return %arg0, %c0_i32 : i32, i32
  }
  func.func @transform_4(%arg0: i32) -> (i32, i32) {
    %c0_i32 = arith.constant 0 : i32
    %c0_i32_0 = arith.constant 0 : i32
    %c0_i32_1 = arith.constant 0 : i32
    return %c0_i32, %c0_i32_0 : i32, i32
  }
  func.func @transform_5(%arg0: i32) -> (i32, i32) {
    %c0_i32 = arith.constant 0 : i32
    %c0_i32_0 = arith.constant 0 : i32
    %c0_i32_1 = arith.constant 0 : i32
    return %c0_i32, %c0_i32_0 : i32, i32
  }
  func.func @transform_6(%arg0: i32) -> (i32, i32) {
    %c0_i32 = arith.constant 0 : i32
    %c0_i32_0 = arith.constant 0 : i32
    %c0_i32_1 = arith.constant 0 : i32
    return %c0_i32, %c0_i32_0 : i32, i32
  }
  func.func @transform_7(%arg0: i32) -> (i32, i32) {
    %c0_i32 = arith.constant 0 : i32
    %c0_i32_0 = arith.constant 0 : i32
    %c0_i32_1 = arith.constant 0 : i32
    return %c0_i32, %c0_i32_0 : i32, i32
  }
  func.func @transform_8(%arg0: i32) -> (i32, i32) {
    %c0_i32 = arith.constant 0 : i32
    %c0_i32_0 = arith.constant 0 : i32
    %c0_i32_1 = arith.constant 0 : i32
    return %c0_i32, %c0_i32_0 : i32, i32
  }
  func.func @transform_9(%arg0: i32) -> (i32, i32) {
    %c0_i32 = arith.constant 0 : i32
    %c0_i32_0 = arith.constant 0 : i32
    %c0_i32_1 = arith.constant 0 : i32
    return %c0_i32, %c0_i32_0 : i32, i32
  }
  func.func @transform_10(%arg0: i32) -> (i32, i32) {
    %c0_i32 = arith.constant 0 : i32
    %c0_i32_0 = arith.constant 0 : i32
    return %arg0, %c0_i32 : i32, i32
  }
}

</mosaic_0001>

<llo_original>
// kernel: memactor_forward.1
$region0: #{memactor_forward.1}
  #allocation0 [shape = 'u32[]', space=smem, size = 0x4, offset = 0x4, fixed_abs, tag = 'smem constant byte address 0x4 - core index']
  #allocation1 [shape = 'u32[72,128]{1,0:T(1,128)}', space=vmem, size = 0x9000, scoped, tag = 'internal scratch']
  #allocation2 [shape = 'f32[1,1]{1,0:T(1,128)S(6)}', space=smem, size = 0x200, scoped, tag = 'scoped memory for memactor_forward.1']
  %s0 = inlined_call_operand.<no memory space> [shape: f32[1,1], index: 0, kind: input, shape index: {}]
  %s1 = inlined_call_operand.vmem [shape: f32[8,16], index: 1, kind: input, shape index: {}]
  %s2 = inlined_call_operand.hbm [shape: f32[8,8], index: 2, kind: input, shape index: {}]
  %s3 = inlined_call_operand.vmem [shape: f32[8,1], index: 3, kind: input, shape index: {}]
  %s4 = inlined_call_operand.hbm [shape: f32[16,32], index: 4, kind: input, shape index: {}]
  %s5 = inlined_call_operand.vmem [shape: f32[1,32], index: 5, kind: input, shape index: {}]
  %s6 = inlined_call_operand.vmem [shape: f32[32,32], index: 6, kind: input, shape index: {}]
  %s7 = inlined_call_operand.vmem [shape: f32[1,32], index: 7, kind: input, shape index: {}]
  %s8 = inlined_call_operand.vmem [shape: f32[32,8], index: 8, kind: input, shape index: {}]
  %s9 = inlined_call_operand.vmem [shape: f32[1,8], index: 9, kind: input, shape index: {}]
  %s10 = inlined_call_operand.hbm [shape: f32[8,8], index: 10, kind: output, shape index: {}]
  %s11 = sld [smem:[#allocation0]]
  $region58: #{memactor_forward.1} parent=0
    _
  %s13 = ssub.s32 1, %s11
  %s14 = scalar_select 0, %s13, %s11
  %15 = sst [smem:[#allocation2]] %s0
  $region1: #{memactor_forward.1} parent=0
    #allocation3 [shape = 'u8[4096]{0}', space=vmem, size = 0x1000, scoped, tag = 'input window, operand 2, single buffered']
    #allocation4 [shape = 's32[1]{0}', space=sflag, size = 0x4, scoped, tag = 'scoped memory for memactor_forward.1']
    #allocation5 [shape = 's32[1]{0}', space=sflag, size = 0x4, scoped, tag = 'scoped memory for memactor_forward.1']
    #allocation6 [shape = 'u8[8192]{0}', space=vmem, size = 0x2000, scoped, tag = 'input window, operand 4, single buffered']
    #allocation7 [shape = 's32[1]{0}', space=sflag, size = 0x4, scoped, tag = 'scoped memory for memactor_forward.1']
    #allocation8 [shape = 'u8[4096]{0}', space=vmem, size = 0x1000, scoped, tag = 'output window, operand 0, single buffered']
    %16 = vsyncpa [#allocation4], 0
    %17 = vsyncpa [#allocation7], 0
    %18 = vsyncpa [#allocation5], 0
    // Predicated region
    $region2: #{memactor_forward.1} parent=1 // pred_check
      _
    $region3: #{memactor_forward.1} parent=1 // pred_check_branch
      %20 = sbr.rel (0) target = $region5
    $region4: #{memactor_forward.1} parent=1 // pred_region
      _
    $region5: #{memactor_forward.1} parent=1 // pred_fallthru
      _
    // Predicated region
    $region6: #{memactor_forward.1} parent=1 // pred_check
      _
    $region7: #{memactor_forward.1} parent=1 // pred_check_branch
      %22 = sbr.rel (0) target = $region9
    $region8: #{memactor_forward.1} parent=1 // pred_region
      _
    $region9: #{memactor_forward.1} parent=1 // pred_fallthru
      _
    // Predicated region
    $region10: #{memactor_forward.1} parent=1 // pred_check
      _
    $region11: #{memactor_forward.1} parent=1 // pred_check_branch
      %24 = sbr.rel (0) target = $region13
    $region12: #{memactor_forward.1} parent=1 // pred_region
      %26 = vsyncadd [#allocation4], 0
      %s28 = sshll.u32 %s2, 4
      %s29 = int_to_ptr.hbm [resolvable:$true] %s28
      %s30 = sshll.u32 [#allocation3], 4
      %s31 = int_to_ptr.vmem [resolvable:$true] %s30
      %33 = dma.hbm_to_vmem [thread:$0]  %s29, 128, %s31, [#allocation4]
    $region13: #{memactor_forward.1} parent=1 // pred_fallthru
      _
    // Predicated region
    $region14: #{memactor_forward.1} parent=1 // pred_check
      _
    $region15: #{memactor_forward.1} parent=1 // pred_check_branch
      %35 = sbr.rel (0) target = $region17
    $region16: #{memactor_forward.1} parent=1 // pred_region
      _
    $region17: #{memactor_forward.1} parent=1 // pred_fallthru
      _
    // Predicated region
    $region18: #{memactor_forward.1} parent=1 // pred_check
      _
    $region19: #{memactor_forward.1} parent=1 // pred_check_branch
      %37 = sbr.rel (0) target = $region21
    $region20: #{memactor_forward.1} parent=1 // pred_region
      %39 = vsyncadd [#allocation7], 0
      %s40 = sshll.u32 %s4, 4
      %s41 = int_to_ptr.hbm [resolvable:$true] %s40
      %s42 = sshll.u32 [#allocation6], 4
      %s43 = int_to_ptr.vmem [resolvable:$true] %s42
      %48 = dma.hbm_to_vmem [thread:$0]  %s41, 256, %s43, [#allocation7], 128, 128, 8
    $region21: #{memactor_forward.1} parent=1 // pred_fallthru
      _
    // Predicated region
    $region22: #{memactor_forward.1} parent=1 // pred_check
      _
    $region23: #{memactor_forward.1} parent=1 // pred_check_branch
      %50 = sbr.rel (0) target = $region25
    $region24: #{memactor_forward.1} parent=1 // pred_region
      _
    $region25: #{memactor_forward.1} parent=1 // pred_fallthru
      _
    // Predicated region
    $region26: #{memactor_forward.1} parent=1 // pred_check
      _
    $region27: #{memactor_forward.1} parent=1 // pred_check_branch
      %52 = sbr.rel (0) target = $region29
    $region28: #{memactor_forward.1} parent=1 // pred_region
      _
    $region29: #{memactor_forward.1} parent=1 // pred_fallthru
      _
    // Predicated region
    $region30: #{memactor_forward.1} parent=1 // pred_check
      _
    $region31: #{memactor_forward.1} parent=1 // pred_check_branch
      %54 = sbr.rel (0) target = $region33
    $region32: #{memactor_forward.1} parent=1 // pred_region
      _
    $region33: #{memactor_forward.1} parent=1 // pred_fallthru
      _
    // Predicated region
    $region34: #{memactor_forward.1} parent=1 // pred_check
      _
    $region35: #{memactor_forward.1} parent=1 // pred_check_branch
      %56 = sbr.rel (0) target = $region37
    $region36: #{memactor_forward.1} parent=1 // pred_region
      _
    $region37: #{memactor_forward.1} parent=1 // pred_fallthru
      _
    // Predicated region
    $region38: #{memactor_forward.1} parent=1 // pred_check
      _
    $region39: #{memactor_forward.1} parent=1 // pred_check_branch
      %58 = sbr.rel (0) target = $region41
    $region40: #{memactor_forward.1} parent=1 // pred_region
      _
    $region41: #{memactor_forward.1} parent=1 // pred_fallthru
      _
    // Predicated region
    $region42: #{memactor_forward.1} parent=1 // pred_check
      _
    $region43: #{memactor_forward.1} parent=1 // pred_check_branch
      %60 = sbr.rel (0) target = $region45
    $region44: #{memactor_forward.1} parent=1 // pred_region
      %62 = dma.done [#allocation4], 128
    $region45: #{memactor_forward.1} parent=1 // pred_fallthru
      _
    // Predicated region
    $region46: #{memactor_forward.1} parent=1 // pred_check
      _
    $region47: #{memactor_forward.1} parent=1 // pred_check_branch
      %64 = sbr.rel (0) target = $region49
    $region48: #{memactor_forward.1} parent=1 // pred_region
      %66 = dma.done [#allocation7], 256
    $region49: #{memactor_forward.1} parent=1 // pred_fallthru
      _
    %s67 = sld [smem:[#allocation2]]
    %v68 = vld [vmem:[%s1] sm:$0xff]
    %v69 = vld [vmem:[#allocation6] sm:$0xff]
    %v70 = vld [vmem:[#allocation6 + $0x8] sm:$0xff]
    %v71 = vld [vmem:[%s5] sm:$0x1]
    %v73 = vperm.slane %v71, 0
    %vm75 = vcmask 130048
    %v77 = vsel %vm75, %v68, 0
    %79 = vmatpush.msra.mxu0 0.0
    %80 = vmatpush.msra.mxu0 0.0
    %81 = vmatpush.msra.mxu0 0.0
    %82 = vmatpush.msra.mxu0 0.0
    %83 = vmatpush.msra.mxu0 0.0
    %84 = vmatpush.msra.mxu0 0.0
    %85 = vmatpush.msra.mxu0 0.0
    %86 = vmatpush.msra.mxu0 0.0
    %87 = vmatpush.msra.mxu0 0.0
    %88 = vmatpush.msra.mxu0 0.0
    %89 = vmatpush.msra.mxu0 0.0
    %90 = vmatpush.msra.mxu0 0.0
    %91 = vmatpush.msra.mxu0 0.0
    %92 = vmatpush.msra.mxu0 0.0
    %93 = vmatpush.msra.mxu0 %v70
    %94 = vmatpush.msra.mxu0 %v69
    %95 = vmatmul.f32.gmra.mxu0 %v77
    %v96 = vpop.f32.mrf.mxu0
    %v97 = vadd.f32 %v73, %v96
    %98 = vdwg.mxu0
    %v99 = vmax.f32 %v97, 0.0
    %v100 = vld [vmem:[%s6] sm:$0xff]
    %v101 = vld [vmem:[%s6 + $0x8] sm:$0xff]
    %v102 = vld [vmem:[%s6 + $0x10] sm:$0xff]
    %v103 = vld [vmem:[%s6 + $0x18] sm:$0xff]
    %v104 = vld [vmem:[%s7] sm:$0x1]
    %v106 = vperm.slane %v104, 0
    %vm108 = vcmask 261120
    %v110 = vsel %vm108, %v99, 0
    %112 = vmatpush.msra.mxu0 0.0
    %113 = vmatpush.msra.mxu0 0.0
    %114 = vmatpush.msra.mxu0 0.0
    %115 = vmatpush.msra.mxu0 0.0
    %116 = vmatpush.msra.mxu0 0.0
    %117 = vmatpush.msra.mxu0 0.0
    %118 = vmatpush.msra.mxu0 0.0
    %119 = vmatpush.msra.mxu0 0.0
    %120 = vmatpush.msra.mxu0 0.0
    %121 = vmatpush.msra.mxu0 0.0
    %122 = vmatpush.msra.mxu0 0.0
    %123 = vmatpush.msra.mxu0 0.0
    %124 = vmatpush.msra.mxu0 %v103
    %125 = vmatpush.msra.mxu0 %v102
    %126 = vmatpush.msra.mxu0 %v101
    %127 = vmatpush.msra.mxu0 %v100
    %128 = vmatmul.f32.gmra.mxu0 %v110
    %v129 = vpop.f32.mrf.mxu0
    %v130 = vadd.f32 %v106, %v129
    %131 = vdwg.mxu0
    %v132 = vmax.f32 %v130, 0.0
    %v133 = vld [vmem:[%s8] sm:$0xff]
    %v134 = vld [vmem:[%s8 + $0x8] sm:$0xff]
    %v135 = vld [vmem:[%s8 + $0x10] sm:$0xff]
    %v136 = vld [vmem:[%s8 + $0x18] sm:$0xff]
    %v137 = vld [vmem:[%s9] sm:$0x1]
    %v139 = vperm.slane %v137, 0
    %v142 = vsel %vm108, %v132, 0
    %144 = vmatpush.msra.mxu0 0.0
    %145 = vmatpush.msra.mxu0 0.0
    %146 = vmatpush.msra.mxu0 0.0
    %147 = vmatpush.msra.mxu0 0.0
    %148 = vmatpush.msra.mxu0 0.0
    %149 = vmatpush.msra.mxu0 0.0
    %150 = vmatpush.msra.mxu0 0.0
    %151 = vmatpush.msra.mxu0 0.0
    %152 = vmatpush.msra.mxu0 0.0
    %153 = vmatpush.msra.mxu0 0.0
    %154 = vmatpush.msra.mxu0 0.0
    %155 = vmatpush.msra.mxu0 0.0
    %156 = vmatpush.msra.mxu0 %v136
    %157 = vmatpush.msra.mxu0 %v135
    %158 = vmatpush.msra.mxu0 %v134
    %159 = vmatpush.msra.mxu0 %v133
    %160 = vmatmul.f32.gmra.mxu0 %v142
    %v161 = vpop.f32.mrf.mxu0
    %v162 = vadd.f32 %v139, %v161
    %163 = vdwg.mxu0
    %v164 = vadd.f32 %v162, 1.0
    %vm165 = vcmp.ge.f32.partialorder %v162, -1.0
    %v166 = vstv %s67
    %v167 = vmul.f32 %v166, %v164
    %v168 = vsel %vm165, %v164, %v167
    %s169 = ssub.f32 1.0, %s67
    %v170 = vsub.f32 %v162, 1.0
    %v171 = vmax.f32 %v170, 0.0
    %v172 = vstv %s169
    %v173 = vmul.f32 %v172, %v171
    %v174 = vsub.f32 %v168, %v173
    %v175 = vsub.f32 %v174, 1.0
    %v176 = vld [vmem:[%s3] sm:$0xff]
    %v177 = vmul.f32 %v176, -10.0
    %v178 = vmul.f32 %v177, 1.442695
    %v179 = vpow.pop %v178
    %v180 = vld [vmem:[#allocation3] sm:$0xff]
    %182 = vset.pattern.permute.xlu0 0
    %183 = vperm.xlu0 %182, %v179
    %v184 = vpop.permute.xlu0 %183
    %v186 = vmul.f32 %v180, %v184
    %v187 = vsub.f32 1.0, %v179
    %189 = vset.pattern.permute.xlu0 0
    %190 = vperm.xlu0 %189, %v187
    %v191 = vpop.permute.xlu0 %190
    %v193 = vmul.f32 %v191, %v175
    %v194 = vadd.f32 %v186, %v193
    %vm195 = vcmask 64512
    %196 = vst.msk [vmem:[#allocation8] sm:$0xff] %vm195, %v194
    // Predicated region
    $region50: #{memactor_forward.1} parent=1 // pred_check
      _
    $region51: #{memactor_forward.1} parent=1 // pred_check_branch
      %198 = sbr.rel (0) target = $region53
    $region52: #{memactor_forward.1} parent=1 // pred_region
      %200 = vsyncadd [#allocation5], 0
      %s202 = sshll.u32 [#allocation8], 4
      %s203 = int_to_ptr.vmem [resolvable:$true] %s202
      %s204 = sshll.u32 %s10, 4
      %s205 = int_to_ptr.hbm [resolvable:$true] %s204
      %207 = dma.vmem_to_hbm [thread:$0]  %s203, 128, %s205, [#allocation5]
    $region53: #{memactor_forward.1} parent=1 // pred_fallthru
      _
    // Predicated region
    $region54: #{memactor_forward.1} parent=1 // pred_check
      _
    $region55: #{memactor_forward.1} parent=1 // pred_check_branch
      %209 = sbr.rel (0) target = $region57
    $region56: #{memactor_forward.1} parent=1 // pred_region
      %211 = dma.done [#allocation5], 128
    $region57: #{memactor_forward.1} parent=1 // pred_fallthru
      _
    %212 = vsyncpa [#allocation4], 1
    %213 = vsyncpa [#allocation7], 1
    %214 = vsyncpa [#allocation5], 1

</llo_original>
